<compile_context>
chip_gen: v5e
topology: v5e:2x2
jax: 0.10.0
libtpu: 0.0.40
codegen_flags: <defaults>
</compile_context>

<pallas_src>
import jax
import jax.numpy as jnp
from jax.experimental import pallas as pl
from jax.experimental.pallas import tpu as pltpu


def _round_up(x, m):
    return ((x + m - 1) // m) * m


def _pad_to(x, shape):
    pads = [(0, t - s) for s, t in zip(x.shape, shape)]
    if all(p == (0, 0) for p in pads):
        return x
    return jnp.pad(x, pads)


def _fc12_kernel(x_ref, w1_ref, b1_ref, w2_ref, b2_ref, h2_ref):
    # h1 = relu(x @ w1 + b1); h2 = relu(h1 @ w2 + b2)   (f32 accumulation)
    h1 = jnp.dot(x_ref[...], w1_ref[...], preferred_element_type=jnp.float32)
    h1 = jnp.maximum(h1 + b1_ref[...], 0.0).astype(w2_ref.dtype)
    h2 = jnp.dot(h1, w2_ref[...], preferred_element_type=jnp.float32)
    h2_ref[...] = jnp.maximum(h2 + b2_ref[...], 0.0).astype(h2_ref.dtype)


def _fc3_kernel(h2_ref, w3_ref, b3_ref, out_ref):
    # out = h2 @ w3 + b3 on the current (TM, TN) tile (no activation).
    acc = jnp.dot(h2_ref[...], w3_ref[...], preferred_element_type=jnp.float32)
    out_ref[...] = (acc + b3_ref[...]).astype(out_ref.dtype)


def pointnet_decoder_forward(z, imu_gps_seq, params, num_points,
                             out_dtype=jnp.bfloat16):
    """z: (B, latent_dim); imu_gps_seq: (B, seq, feat) or (B, imu_gps_dim)."""
    B, latent_dim = z.shape
    imu_flat = imu_gps_seq.reshape(B, -1)                 # .view(B, -1)
    x = jnp.concatenate([z, imu_flat], axis=1)            # torch.cat([z, imu], 1)
    d_in = x.shape[1]

    w1, b1 = params["w1"], params["b1"]
    w2, b2 = params["w2"], params["b2"]
    w3, b3 = params["w3"], params["b3"]
    H1 = w1.shape[1]                                      # 256
    H2 = w2.shape[1]                                      # 512
    out_dim = w3.shape[1]                                 # num_points * 4

    # ---- tiling ---------------------------------------------------------
    TM = min(512, _round_up(B, 16))                       # 16-aligned (bf16 sublanes)
    M_pad = _round_up(B, TM)
    TN = min(2048, _round_up(out_dim, 128))               # lane-dense fc3 N tile
    N_pad = _round_up(out_dim, TN)
    K_pad = _round_up(d_in, 128)                          # fill MXU contraction dim

    # ---- dtype / padding (bf16 weights & activations, f32 biases) --------
    bf16 = jnp.bfloat16
    x_p = _pad_to(x, (M_pad, K_pad)).astype(bf16)
    w1p = _pad_to(w1, (K_pad, H1)).astype(bf16)
    b1f = b1.reshape(1, H1).astype(jnp.float32)
    w2b = w2.astype(bf16)
    b2f = b2.reshape(1, H2).astype(jnp.float32)
    w3p = _pad_to(w3, (H2, N_pad)).astype(bf16)
    b3f = _pad_to(b3.reshape(1, out_dim).astype(jnp.float32), (1, N_pad))

    # ---- stage 1: fc1 + fc2 for all rows (tiny; weights fully resident) ---
    h2 = pl.pallas_call(
        _fc12_kernel,
        out_shape=jax.ShapeDtypeStruct((M_pad, H2), bf16),
        grid_spec=pltpu.PrefetchScalarGridSpec(
            num_scalar_prefetch=0,
            grid=(M_pad // TM,),
            in_specs=[
                pl.BlockSpec((TM, K_pad), lambda i: (i, 0)),   # x tile
                pl.BlockSpec((K_pad, H1), lambda i: (0, 0)),   # w1 (resident)
                pl.BlockSpec((1, H1), lambda i: (0, 0)),       # b1
                pl.BlockSpec((H1, H2), lambda i: (0, 0)),      # w2 (resident)
                pl.BlockSpec((1, H2), lambda i: (0, 0)),       # b2
            ],
            out_specs=pl.BlockSpec((TM, H2), lambda i: (i, 0)),
        ),
        compiler_params=pltpu.CompilerParams(
            dimension_semantics=("parallel",),
        ),
    )(x_p, w1p, b1f, w2b, b2f)

    # ---- stage 2: fc3 ------------------------------------------------------
    # Grid = (N tiles OUTER, batch tiles INNER): w3's block index depends only
    # on the outer axis, so each w3 tile is DMA'd from HBM exactly once while
    # the (small) h2 and output tiles stream. Both axes are independent, so
    # both are "parallel" (v7x megacore splits the w3 stream across TCs).
    flops = 2 * M_pad * H2 * N_pad
    bytes_accessed = (
        2 * H2 * N_pad                                            # w3 (bf16, once)
        + 2 * M_pad * H2 * (N_pad // TN)                          # h2 re-reads
        + 4 * N_pad                                               # b3
        + jnp.dtype(out_dtype).itemsize * M_pad * N_pad           # output
    )

    out = pl.pallas_call(
        _fc3_kernel,
        out_shape=jax.ShapeDtypeStruct((M_pad, N_pad), out_dtype),
        grid_spec=pltpu.PrefetchScalarGridSpec(
            num_scalar_prefetch=0,
            grid=(N_pad // TN, M_pad // TM),
            in_specs=[
                pl.BlockSpec((TM, H2), lambda j, i: (i, 0)),   # h2 tile
                pl.BlockSpec((H2, TN), lambda j, i: (0, j)),   # w3 N tile (outer only)
                pl.BlockSpec((1, TN), lambda j, i: (0, j)),    # b3 N tile
            ],
            out_specs=pl.BlockSpec((TM, TN), lambda j, i: (i, j)),
        ),
        compiler_params=pltpu.CompilerParams(
            dimension_semantics=("parallel", "parallel"),
            vmem_limit_bytes=32 * 1024 * 1024,
        ),
        cost_estimate=pl.CostEstimate(
            flops=int(flops), transcendentals=0,
            bytes_accessed=int(bytes_accessed)),
    )(h2, w3p, b3f)

    # slice away M/N padding, then row-major .view(-1, 4, num_points)
    return out[:B, :out_dim].reshape(-1, 4, num_points)


def init_params(key, imu_gps_dim, latent_dim, num_points):
    """Deterministic synthetic parameters matching the PyTorch module shapes,
    stored pre-transposed as (in, out)."""
    d_in = latent_dim + imu_gps_dim
    k1, k2, k3, k4, k5, k6 = jax.random.split(key, 6)

    def lin(kw, kb, fan_in, fan_out):
        bound = 1.0 / jnp.sqrt(fan_in)
        w = jax.random.uniform(kw, (fan_in, fan_out), jnp.float32, -bound, bound)
        b = jax.random.uniform(kb, (1, fan_out), jnp.float32, -bound, bound)
        return w, b

    w1, b1 = lin(k1, k2, d_in, 256)
    w2, b2 = lin(k3, k4, 256, 512)
    w3, b3 = lin(k5, k6, 512, num_points * 4)
    return {"w1": w1, "b1": b1, "w2": w2, "b2": b2, "w3": w3, "b3": b3}


if __name__ == "__main__":
    # small shapes consistent with the module
    B = 2
    latent_dim = 32
    seq, feat = 8, 8
    imu_gps_dim = seq * feat          # flattened per-batch IMU/GPS features
    num_points = 64

    key = jax.random.PRNGKey(0)
    kz, kimu, kp = jax.random.split(key, 3)
    z = jax.random.normal(kz, (B, latent_dim), jnp.float32)
    imu_gps_seq = jax.random.normal(kimu, (B, seq, feat), jnp.float32)
    params = init_params(kp, imu_gps_dim, latent_dim, num_points)

    out = pointnet_decoder_forward(z, imu_gps_seq, params, num_points)
    out = jax.block_until_ready(out)
    assert out.shape == (B, 4, num_points), out.shape

    # reference check in plain JAX (f32); kernel uses bf16 weights/activations
    # and a bf16 output with f32 accumulation -> loose tolerance.
    x = jnp.concatenate([z, imu_gps_seq.reshape(B, -1)], axis=1)
    h = jnp.maximum(x @ params["w1"] + params["b1"], 0.0)
    h = jnp.maximum(h @ params["w2"] + params["b2"], 0.0)
    ref = (h @ params["w3"] + params["b3"]).reshape(-1, 4, num_points)
    out_f32 = out.astype(jnp.float32)
    assert jnp.allclose(out_f32, ref, atol=5e-2, rtol=5e-2), float(
        jnp.max(jnp.abs(out_f32 - ref)))

    print("KERNEL_OK")
</pallas_src>

<mosaic_0001>
module attributes {stable_mosaic.version = 11 : i64} {
  func.func @_fc12_kernel(%arg0: i32, %arg1: memref<16x128xbf16, #tpu.memory_space<vmem>>, %arg2: memref<128x256xbf16, #tpu.memory_space<vmem>>, %arg3: memref<1x256xf32, #tpu.memory_space<vmem>>, %arg4: memref<256x512xbf16, #tpu.memory_space<vmem>>, %arg5: memref<1x512xf32, #tpu.memory_space<vmem>>, %arg6: memref<16x512xbf16, #tpu.memory_space<vmem>>) attributes {dimension_semantics = [#tpu.dimension_semantics<parallel>], iteration_bounds = array<i64: 1>, scalar_prefetch = 0 : i64, scratch_operands = 0 : i64, tpu.core_type = #tpu.core_type<tc>, window_params = [{transform_indices = @transform_0, window_bounds = array<i64: 16, 128>}, {pipeline_mode = #tpu.pipeline_mode<synchronous>, transform_indices = @transform_1, window_bounds = array<i64: 128, 256>}, {pipeline_mode = #tpu.pipeline_mode<synchronous>, transform_indices = @transform_2, window_bounds = array<i64: 1, 256>}, {pipeline_mode = #tpu.pipeline_mode<synchronous>, transform_indices = @transform_3, window_bounds = array<i64: 256, 512>}, {pipeline_mode = #tpu.pipeline_mode<synchronous>, transform_indices = @transform_4, window_bounds = array<i64: 1, 512>}, {transform_indices = @transform_5, window_bounds = array<i64: 16, 512>}]} {
    %c0 = arith.constant 0 : index
    %c0_0 = arith.constant 0 : index
    %0 = vector.load %arg1[%c0, %c0_0] : memref<16x128xbf16, #tpu.memory_space<vmem>>, vector<16x128xbf16>
    %c0_1 = arith.constant 0 : index
    %c0_2 = arith.constant 0 : index
    %1 = vector.load %arg2[%c0_1, %c0_2] : memref<128x256xbf16, #tpu.memory_space<vmem>>, vector<128x256xbf16>
    %cst = arith.constant dense<0.000000e+00> : vector<16x256xf32>
    %2 = tpu.matmul %0, %1, %cst {dimension_numbers = #tpu.dot_dimension_numbers<[1], [0], [0], [1], [0, 0, 1, 1], [], []>} : vector<16x128xbf16>, vector<128x256xbf16>, vector<16x256xf32> -> vector<16x256xf32>
    %c0_3 = arith.constant 0 : index
    %c0_4 = arith.constant 0 : index
    %3 = vector.load %arg3[%c0_3, %c0_4] : memref<1x256xf32, #tpu.memory_space<vmem>>, vector<1x256xf32>
    %4 = vector.broadcast %3 : vector<1x256xf32> to vector<16x256xf32>
    %5 = arith.addf %2, %4 : vector<16x256xf32>
    %cst_5 = arith.constant 0.000000e+00 : f32
    %6 = vector.broadcast %cst_5 : f32 to vector<16x256xf32>
    %7 = arith.maximumf %5, %6 : vector<16x256xf32>
    %8 = arith.truncf %7 : vector<16x256xf32> to vector<16x256xbf16>
    %c0_6 = arith.constant 0 : index
    %c0_7 = arith.constant 0 : index
    %9 = vector.load %arg4[%c0_6, %c0_7] : memref<256x512xbf16, #tpu.memory_space<vmem>>, vector<256x512xbf16>
    %cst_8 = arith.constant dense<0.000000e+00> : vector<16x512xf32>
    %10 = tpu.matmul %8, %9, %cst_8 {dimension_numbers = #tpu.dot_dimension_numbers<[1], [0], [0], [1], [0, 0, 1, 1], [], []>} : vector<16x256xbf16>, vector<256x512xbf16>, vector<16x512xf32> -> vector<16x512xf32>
    %c0_9 = arith.constant 0 : index
    %c0_10 = arith.constant 0 : index
    %11 = vector.load %arg5[%c0_9, %c0_10] : memref<1x512xf32, #tpu.memory_space<vmem>>, vector<1x512xf32>
    %12 = vector.broadcast %11 : vector<1x512xf32> to vector<16x512xf32>
    %13 = arith.addf %10, %12 : vector<16x512xf32>
    %cst_11 = arith.constant 0.000000e+00 : f32
    %14 = vector.broadcast %cst_11 : f32 to vector<16x512xf32>
    %15 = arith.maximumf %13, %14 : vector<16x512xf32>
    %16 = arith.truncf %15 : vector<16x512xf32> to vector<16x512xbf16>
    %c0_12 = arith.constant 0 : index
    %c0_13 = arith.constant 0 : index
    %17 = vector.load %arg6[%c0_12, %c0_13] : memref<16x512xbf16, #tpu.memory_space<vmem>>, vector<16x512xbf16>
    tpu.vector_store %arg6[%c0_12, %c0_13], %16 {strides = array<i32>} : memref<16x512xbf16, #tpu.memory_space<vmem>>, vector<16x512xbf16>,
    return
  }
  func.func @transform_0(%arg0: i32) -> (i32, i32) {
    %c0_i32 = arith.constant 0 : i32
    %c0_i32_0 = arith.constant 0 : i32
    return %arg0, %c0_i32 : i32, i32
  }
  func.func @transform_1(%arg0: i32) -> (i32, i32) {
    %c0_i32 = arith.constant 0 : i32
    %c0_i32_0 = arith.constant 0 : i32
    %c0_i32_1 = arith.constant 0 : i32
    return %c0_i32, %c0_i32_0 : i32, i32
  }
  func.func @transform_2(%arg0: i32) -> (i32, i32) {
    %c0_i32 = arith.constant 0 : i32
    %c0_i32_0 = arith.constant 0 : i32
    %c0_i32_1 = arith.constant 0 : i32
    return %c0_i32, %c0_i32_0 : i32, i32
  }
  func.func @transform_3(%arg0: i32) -> (i32, i32) {
    %c0_i32 = arith.constant 0 : i32
    %c0_i32_0 = arith.constant 0 : i32
    %c0_i32_1 = arith.constant 0 : i32
    return %c0_i32, %c0_i32_0 : i32, i32
  }
  func.func @transform_4(%arg0: i32) -> (i32, i32) {
    %c0_i32 = arith.constant 0 : i32
    %c0_i32_0 = arith.constant 0 : i32
    %c0_i32_1 = arith.constant 0 : i32
    return %c0_i32, %c0_i32_0 : i32, i32
  }
  func.func @transform_5(%arg0: i32) -> (i32, i32) {
    %c0_i32 = arith.constant 0 : i32
    %c0_i32_0 = arith.constant 0 : i32
    return %arg0, %c0_i32 : i32, i32
  }
}

</mosaic_0001>

<llo_original>
// kernel: tpu_custom_call.1
$region0: #{tpu_custom_call.1}
  #allocation0 [shape = 'u32[]', space=smem, size = 0x4, offset = 0x4, fixed_abs, tag = 'smem constant byte address 0x4 - core index']
  #allocation1 [shape = 'u32[72,128]{1,0:T(1,128)}', space=vmem, size = 0x9000, scoped, tag = 'internal scratch']
  %s0 = inlined_call_operand.hbm [shape: bf16[16,128], index: 0, kind: input, shape index: {}]
  %s1 = inlined_call_operand.hbm [shape: bf16[128,256], index: 1, kind: input, shape index: {}]
  %s2 = inlined_call_operand.hbm [shape: f32[1,256], index: 2, kind: input, shape index: {}]
  %s3 = inlined_call_operand.hbm [shape: bf16[256,512], index: 3, kind: input, shape index: {}]
  %s4 = inlined_call_operand.hbm [shape: f32[1,512], index: 4, kind: input, shape index: {}]
  %s5 = inlined_call_operand.hbm [shape: bf16[16,512], index: 5, kind: output, shape index: {}]
  %s6 = sld [smem:[#allocation0]]
  $region50: #{tpu_custom_call.1} parent=0
    _
  %s8 = ssub.s32 1, %s6
  %s9 = scalar_select 0, %s8, %s6
  $region1: #{tpu_custom_call.1} parent=0
    #allocation2 [shape = 'u8[4096]{0}', space=vmem, size = 0x1000, scoped, tag = 'input window, operand 0, single buffered']
    #allocation3 [shape = 's32[1]{0}', space=sflag, size = 0x4, scoped, tag = 'scoped memory for tpu_custom_call.1']
    #allocation4 [shape = 's32[1]{0}', space=sflag, size = 0x4, scoped, tag = 'scoped memory for tpu_custom_call.1']
    #allocation5 [shape = 'u8[65536]{0}', space=vmem, size = 0x10000, scoped, tag = 'input window, operand 1, single buffered']
    #allocation6 [shape = 's32[1]{0}', space=sflag, size = 0x4, scoped, tag = 'scoped memory for tpu_custom_call.1']
    #allocation7 [shape = 'u8[1024]{0}', space=vmem, size = 0x400, scoped, tag = 'input window, operand 2, single buffered']
    #allocation8 [shape = 'u8[262144]{0}', space=vmem, size = 0x40000, scoped, tag = 'input window, operand 3, single buffered']
    #allocation9 [shape = 's32[1]{0}', space=sflag, size = 0x4, scoped, tag = 'scoped memory for tpu_custom_call.1']
    #allocation10 [shape = 'u8[2048]{0}', space=vmem, size = 0x800, scoped, tag = 'input window, operand 4, single buffered']
    #allocation11 [shape = 'u8[16384]{0}', space=vmem, size = 0x4000, scoped, tag = 'output window, operand 0, single buffered']
    %10 = vsyncpa [#allocation3], 0
    %11 = vsyncpa [#allocation6], 0
    %12 = vsyncpa [#allocation9], 0
    %13 = vsyncpa [#allocation4], 0
    // Predicated region
    $region2: #{tpu_custom_call.1} parent=1 // pred_check
      _
    $region3: #{tpu_custom_call.1} parent=1 // pred_check_branch
      %15 = sbr.rel (0) target = $region5
    $region4: #{tpu_custom_call.1} parent=1 // pred_region
      %17 = vsyncadd [#allocation3], 0
      %s18 = sshll.u32 %s0, 4
      %s19 = int_to_ptr.hbm [resolvable:$true] %s18
      %s20 = sshll.u32 [#allocation2], 4
      %s21 = int_to_ptr.vmem [resolvable:$true] %s20
      %26 = dma.hbm_to_vmem [thread:$0]  %s19, 128, %s21, [#allocation3], 64, 64, 4
    $region5: #{tpu_custom_call.1} parent=1 // pred_fallthru
      _
    // Predicated region
    $region6: #{tpu_custom_call.1} parent=1 // pred_check
      _
    $region7: #{tpu_custom_call.1} parent=1 // pred_check_branch
      %28 = sbr.rel (0) target = $region9
    $region8: #{tpu_custom_call.1} parent=1 // pred_region
      %30 = vsyncadd [#allocation6], 0
      %s31 = sshll.u32 %s1, 4
      %s32 = int_to_ptr.hbm [resolvable:$true] %s31
      %s33 = sshll.u32 [#allocation5], 4
      %s34 = int_to_ptr.vmem [resolvable:$true] %s33
      %39 = dma.hbm_to_vmem [thread:$0]  %s32, 2048, %s34, [#allocation6], 128, 128, 8
    $region9: #{tpu_custom_call.1} parent=1 // pred_fallthru
      _
    // Predicated region
    $region10: #{tpu_custom_call.1} parent=1 // pred_check
      _
    $region11: #{tpu_custom_call.1} parent=1 // pred_check_branch
      %41 = sbr.rel (0) target = $region13
    $region12: #{tpu_custom_call.1} parent=1 // pred_region
      %43 = vsyncadd [#allocation6], 0
      %s45 = sshll.u32 %s2, 4
      %s46 = int_to_ptr.hbm [resolvable:$true] %s45
      %s47 = sshll.u32 [#allocation7], 4
      %s48 = int_to_ptr.vmem [resolvable:$true] %s47
      %50 = dma.hbm_to_vmem [thread:$0]  %s46, 32, %s48, [#allocation6]
    $region13: #{tpu_custom_call.1} parent=1 // pred_fallthru
      _
    // Predicated region
    $region14: #{tpu_custom_call.1} parent=1 // pred_check
      _
    $region15: #{tpu_custom_call.1} parent=1 // pred_check_branch
      %52 = sbr.rel (0) target = $region17
    $region16: #{tpu_custom_call.1} parent=1 // pred_region
      %54 = vsyncadd [#allocation9], 0
      %s55 = sshll.u32 %s3, 4
      %s56 = int_to_ptr.hbm [resolvable:$true] %s55
      %s57 = sshll.u32 [#allocation8], 4
      %s58 = int_to_ptr.vmem [resolvable:$true] %s57
      %63 = dma.hbm_to_vmem [thread:$0]  %s56, 8192, %s58, [#allocation9], 256, 256, 16
    $region17: #{tpu_custom_call.1} parent=1 // pred_fallthru
      _
    // Predicated region
    $region18: #{tpu_custom_call.1} parent=1 // pred_check
      _
    $region19: #{tpu_custom_call.1} parent=1 // pred_check_branch
      %65 = sbr.rel (0) target = $region21
    $region20: #{tpu_custom_call.1} parent=1 // pred_region
      %67 = vsyncadd [#allocation9], 0
      %s69 = sshll.u32 %s4, 4
      %s70 = int_to_ptr.hbm [resolvable:$true] %s69
      %s71 = sshll.u32 [#allocation10], 4
      %s72 = int_to_ptr.vmem [resolvable:$true] %s71
      %74 = dma.hbm_to_vmem [thread:$0]  %s70, 64, %s72, [#allocation9]
    $region21: #{tpu_custom_call.1} parent=1 // pred_fallthru
      _
    // Predicated region
    $region22: #{tpu_custom_call.1} parent=1 // pred_check
      _
    $region23: #{tpu_custom_call.1} parent=1 // pred_check_branch
      %76 = sbr.rel (0) target = $region25
    $region24: #{tpu_custom_call.1} parent=1 // pred_region
      %78 = dma.done [#allocation3], 128
    $region25: #{tpu_custom_call.1} parent=1 // pred_fallthru
      _
    // Predicated region
    $region26: #{tpu_custom_call.1} parent=1 // pred_check
      _
    $region27: #{tpu_custom_call.1} parent=1 // pred_check_branch
      %80 = sbr.rel (0) target = $region29
    $region28: #{tpu_custom_call.1} parent=1 // pred_region
      %82 = dma.done [#allocation6], 2048
    $region29: #{tpu_custom_call.1} parent=1 // pred_fallthru
      _
    // Predicated region
    $region30: #{tpu_custom_call.1} parent=1 // pred_check
      _
    $region31: #{tpu_custom_call.1} parent=1 // pred_check_branch
      %84 = sbr.rel (0) target = $region33
    $region32: #{tpu_custom_call.1} parent=1 // pred_region
      %86 = dma.done [#allocation6], 32
    $region33: #{tpu_custom_call.1} parent=1 // pred_fallthru
      _
    // Predicated region
    $region34: #{tpu_custom_call.1} parent=1 // pred_check
      _
    $region35: #{tpu_custom_call.1} parent=1 // pred_check_branch
      %88 = sbr.rel (0) target = $region37
    $region36: #{tpu_custom_call.1} parent=1 // pred_region
      %90 = dma.done [#allocation9], 8192
    $region37: #{tpu_custom_call.1} parent=1 // pred_fallthru
      _
    // Predicated region
    $region38: #{tpu_custom_call.1} parent=1 // pred_check
      _
    $region39: #{tpu_custom_call.1} parent=1 // pred_check_branch
      %92 = sbr.rel (0) target = $region41
    $region40: #{tpu_custom_call.1} parent=1 // pred_region
      %94 = dma.done [#allocation9], 64
    $region41: #{tpu_custom_call.1} parent=1 // pred_fallthru
      _
    %v95 = vld [vmem:[#allocation2] sm:$0xf]
    %v96 = vld [vmem:[#allocation2 + $0x4] sm:$0xf]
    %v97 = vld [vmem:[#allocation5] sm:$0xff]
    %v98 = vld [vmem:[#allocation5 + $0x8] sm:$0xff]
    %v99 = vld [vmem:[#allocation5 + $0x10] sm:$0xff]
    %v100 = vld [vmem:[#allocation5 + $0x18] sm:$0xff]
    %v101 = vld [vmem:[#allocation5 + $0x20] sm:$0xff]
    %v102 = vld [vmem:[#allocation5 + $0x28] sm:$0xff]
    %v103 = vld [vmem:[#allocation5 + $0x30] sm:$0xff]
    %v104 = vld [vmem:[#allocation5 + $0x38] sm:$0xff]
    %v105 = vld [vmem:[#allocation5 + $0x40] sm:$0xff]
    %v106 = vld [vmem:[#allocation5 + $0x48] sm:$0xff]
    %v107 = vld [vmem:[#allocation5 + $0x50] sm:$0xff]
    %v108 = vld [vmem:[#allocation5 + $0x58] sm:$0xff]
    %v109 = vld [vmem:[#allocation5 + $0x60] sm:$0xff]
    %v110 = vld [vmem:[#allocation5 + $0x68] sm:$0xff]
    %v111 = vld [vmem:[#allocation5 + $0x70] sm:$0xff]
    %v112 = vld [vmem:[#allocation5 + $0x78] sm:$0xff]
    %v113 = vld [vmem:[#allocation7] sm:$0x3]
    %v115 = vperm.slane %v113, 0
    %v116 = vperm.slane %v113, 1
    %v121 = vunpack.c.l.b16 %v95
    %v122 = vunpack.c.l.b16 %v96
    %v123 = vpack.c.b16 %v122, %v121
    %v141 = vunpack.c.l.b16 %v97
    %v142 = vunpack.c.h.b16 %v97
    %v143 = vunpack.c.l.b16 %v98
    %v144 = vunpack.c.h.b16 %v98
    %v145 = vunpack.c.l.b16 %v99
    %v146 = vunpack.c.h.b16 %v99
    %v147 = vunpack.c.l.b16 %v100
    %v148 = vunpack.c.h.b16 %v100
    %v149 = vunpack.c.l.b16 %v101
    %v150 = vunpack.c.h.b16 %v101
    %v151 = vunpack.c.l.b16 %v102
    %v152 = vunpack.c.h.b16 %v102
    %v153 = vunpack.c.l.b16 %v103
    %v154 = vunpack.c.h.b16 %v103
    %v155 = vunpack.c.l.b16 %v104
    %v156 = vunpack.c.h.b16 %v104
    %v157 = vunpack.c.l.b16 %v105
    %v158 = vunpack.c.h.b16 %v105
    %v159 = vunpack.c.l.b16 %v106
    %v160 = vunpack.c.h.b16 %v106
    %v161 = vunpack.c.l.b16 %v107
    %v162 = vunpack.c.h.b16 %v107
    %v163 = vunpack.c.l.b16 %v108
    %v164 = vunpack.c.h.b16 %v108
    %v165 = vunpack.c.l.b16 %v109
    %v166 = vunpack.c.h.b16 %v109
    %v167 = vunpack.c.l.b16 %v110
    %v168 = vunpack.c.h.b16 %v110
    %v169 = vunpack.c.l.b16 %v111
    %v170 = vunpack.c.h.b16 %v111
    %v171 = vunpack.c.l.b16 %v112
    %v172 = vunpack.c.h.b16 %v112
    %v173 = vpack.c.b16 %v143, %v141
    %v174 = vpack.c.b16 %v144, %v142
    %v175 = vpack.c.b16 %v147, %v145
    %v176 = vpack.c.b16 %v148, %v146
    %v177 = vpack.c.b16 %v151, %v149
    %v178 = vpack.c.b16 %v152, %v150
    %v179 = vpack.c.b16 %v155, %v153
    %v180 = vpack.c.b16 %v156, %v154
    %v181 = vpack.c.b16 %v159, %v157
    %v182 = vpack.c.b16 %v160, %v158
    %v183 = vpack.c.b16 %v163, %v161
    %v184 = vpack.c.b16 %v164, %v162
    %v185 = vpack.c.b16 %v167, %v165
    %v186 = vpack.c.b16 %v168, %v166
    %v187 = vpack.c.b16 %v171, %v169
    %v188 = vpack.c.b16 %v172, %v170
    %205 = vmatpush.bf16.msra.mxu0 %v187
    %206 = vmatpush.bf16.msra.mxu0 %v185
    %207 = vmatpush.bf16.msra.mxu0 %v183
    %208 = vmatpush.bf16.msra.mxu0 %v181
    %209 = vmatpush.bf16.msra.mxu0 %v179
    %210 = vmatpush.bf16.msra.mxu0 %v177
    %211 = vmatpush.bf16.msra.mxu0 %v175
    %212 = vmatpush.bf16.msra.mxu0 %v173
    %213 = vmatmul.bf16.gmra.mxu0 %v123
    %v214 = vpop.f32.mrf.mxu0
    %v215 = vadd.f32 %v115, %v214
    %v216 = vpop.f32.mrf.mxu0
    %v217 = vadd.f32 %v115, %v216
    %218 = vdwg.mxu0
    %219 = vmatpush.bf16.msra.mxu0 %v188
    %220 = vmatpush.bf16.msra.mxu0 %v186
    %221 = vmatpush.bf16.msra.mxu0 %v184
    %222 = vmatpush.bf16.msra.mxu0 %v182
    %223 = vmatpush.bf16.msra.mxu0 %v180
    %224 = vmatpush.bf16.msra.mxu0 %v178
    %225 = vmatpush.bf16.msra.mxu0 %v176
    %226 = vmatpush.bf16.msra.mxu0 %v174
    %227 = vmatmul.bf16.gmra.mxu0 %v123
    %v228 = vpop.f32.mrf.mxu0
    %v229 = vadd.f32 %v116, %v228
    %v230 = vpop.f32.mrf.mxu0
    %v231 = vadd.f32 %v116, %v230
    %232 = vdwg.mxu0
    %v233 = vmax.f32 %v215, 0.0
    %v234 = vmax.f32 %v229, 0.0
    %v235 = vmax.f32 %v217, 0.0
    %v236 = vmax.f32 %v231, 0.0
    %v237 = vpack.c.bf16 %v235, %v233
    %v238 = vpack.c.bf16 %v236, %v234
    %v239 = vld [vmem:[#allocation8] sm:$0xff]
    %v240 = vld [vmem:[#allocation8 + $0x8] sm:$0xff]
    %v241 = vld [vmem:[#allocation8 + $0x10] sm:$0xff]
    %v242 = vld [vmem:[#allocation8 + $0x18] sm:$0xff]
    %v243 = vld [vmem:[#allocation8 + $0x20] sm:$0xff]
    %v244 = vld [vmem:[#allocation8 + $0x28] sm:$0xff]
    %v245 = vld [vmem:[#allocation8 + $0x30] sm:$0xff]
    %v246 = vld [vmem:[#allocation8 + $0x38] sm:$0xff]
    %v247 = vld [vmem:[#allocation8 + $0x40] sm:$0xff]
    %v248 = vld [vmem:[#allocation8 + $0x48] sm:$0xff]
    %v249 = vld [vmem:[#allocation8 + $0x50] sm:$0xff]
    %v250 = vld [vmem:[#allocation8 + $0x58] sm:$0xff]
    %v251 = vld [vmem:[#allocation8 + $0x60] sm:$0xff]
    %v252 = vld [vmem:[#allocation8 + $0x68] sm:$0xff]
    %v253 = vld [vmem:[#allocation8 + $0x70] sm:$0xff]
    %v254 = vld [vmem:[#allocation8 + $0x78] sm:$0xff]
    %v255 = vld [vmem:[#allocation8 + $0x80] sm:$0xff]
    %v256 = vld [vmem:[#allocation8 + $0x88] sm:$0xff]
    %v257 = vld [vmem:[#allocation8 + $0x90] sm:$0xff]
    %v258 = vld [vmem:[#allocation8 + $0x98] sm:$0xff]
    %v259 = vld [vmem:[#allocation8 + $0xa0] sm:$0xff]
    %v260 = vld [vmem:[#allocation8 + $0xa8] sm:$0xff]
    %v261 = vld [vmem:[#allocation8 + $0xb0] sm:$0xff]
    %v262 = vld [vmem:[#allocation8 + $0xb8] sm:$0xff]
    %v263 = vld [vmem:[#allocation8 + $0xc0] sm:$0xff]
    %v264 = vld [vmem:[#allocation8 + $0xc8] sm:$0xff]
    %v265 = vld [vmem:[#allocation8 + $0xd0] sm:$0xff]
    %v266 = vld [vmem:[#allocation8 + $0xd8] sm:$0xff]
    %v267 = vld [vmem:[#allocation8 + $0xe0] sm:$0xff]
    %v268 = vld [vmem:[#allocation8 + $0xe8] sm:$0xff]
    %v269 = vld [vmem:[#allocation8 + $0xf0] sm:$0xff]
    %v270 = vld [vmem:[#allocation8 + $0xf8] sm:$0xff]
    %v271 = vld [vmem:[#allocation8 + $0x100] sm:$0xff]
    %v272 = vld [vmem:[#allocation8 + $0x108] sm:$0xff]
    %v273 = vld [vmem:[#allocation8 + $0x110] sm:$0xff]
    %v274 = vld [vmem:[#allocation8 + $0x118] sm:$0xff]
    %v275 = vld [vmem:[#allocation8 + $0x120] sm:$0xff]
    %v276 = vld [vmem:[#allocation8 + $0x128] sm:$0xff]
    %v277 = vld [vmem:[#allocation8 + $0x130] sm:$0xff]
    %v278 = vld [vmem:[#allocation8 + $0x138] sm:$0xff]
    %v279 = vld [vmem:[#allocation8 + $0x140] sm:$0xff]
    %v280 = vld [vmem:[#allocation8 + $0x148] sm:$0xff]
    %v281 = vld [vmem:[#allocation8 + $0x150] sm:$0xff]
    %v282 = vld [vmem:[#allocation8 + $0x158] sm:$0xff]
    %v283 = vld [vmem:[#allocation8 + $0x160] sm:$0xff]
    %v284 = vld [vmem:[#allocation8 + $0x168] sm:$0xff]
    %v285 = vld [vmem:[#allocation8 + $0x170] sm:$0xff]
    %v286 = vld [vmem:[#allocation8 + $0x178] sm:$0xff]
    %v287 = vld [vmem:[#allocation8 + $0x180] sm:$0xff]
    %v288 = vld [vmem:[#allocation8 + $0x188] sm:$0xff]
    %v289 = vld [vmem:[#allocation8 + $0x190] sm:$0xff]
    %v290 = vld [vmem:[#allocation8 + $0x198] sm:$0xff]
    %v291 = vld [vmem:[#allocation8 + $0x1a0] sm:$0xff]
    %v292 = vld [vmem:[#allocation8 + $0x1a8] sm:$0xff]
    %v293 = vld [vmem:[#allocation8 + $0x1b0] sm:$0xff]
    %v294 = vld [vmem:[#allocation8 + $0x1b8] sm:$0xff]
    %v295 = vld [vmem:[#allocation8 + $0x1c0] sm:$0xff]
    %v296 = vld [vmem:[#allocation8 + $0x1c8] sm:$0xff]
    %v297 = vld [vmem:[#allocation8 + $0x1d0] sm:$0xff]
    %v298 = vld [vmem:[#allocation8 + $0x1d8] sm:$0xff]
    %v299 = vld [vmem:[#allocation8 + $0x1e0] sm:$0xff]
    %v300 = vld [vmem:[#allocation8 + $0x1e8] sm:$0xff]
    %v301 = vld [vmem:[#allocation8 + $0x1f0] sm:$0xff]
    %v302 = vld [vmem:[#allocation8 + $0x1f8] sm:$0xff]
    %v303 = vld [vmem:[#allocation10] sm:$0xf]
    %v305 = vperm.slane %v303, 0
    %v306 = vperm.slane %v303, 1
    %v307 = vperm.slane %v303, 2
    %v308 = vperm.slane %v303, 3
    %v377 = vunpack.c.l.b16 %v239
    %v378 = vunpack.c.h.b16 %v239
    %v379 = vunpack.c.l.b16 %v240
    %v380 = vunpack.c.h.b16 %v240
    %v381 = vunpack.c.l.b16 %v241
    %v382 = vunpack.c.h.b16 %v241
    %v383 = vunpack.c.l.b16 %v242
    %v384 = vunpack.c.h.b16 %v242
    %v385 = vunpack.c.l.b16 %v243
    %v386 = vunpack.c.h.b16 %v243
    %v387 = vunpack.c.l.b16 %v244
    %v388 = vunpack.c.h.b16 %v244
    %v389 = vunpack.c.l.b16 %v245
    %v390 = vunpack.c.h.b16 %v245
    %v391 = vunpack.c.l.b16 %v246
    %v392 = vunpack.c.h.b16 %v246
    %v393 = vunpack.c.l.b16 %v247
    %v394 = vunpack.c.h.b16 %v247
    %v395 = vunpack.c.l.b16 %v248
    %v396 = vunpack.c.h.b16 %v248
    %v397 = vunpack.c.l.b16 %v249
    %v398 = vunpack.c.h.b16 %v249
    %v399 = vunpack.c.l.b16 %v250
    %v400 = vunpack.c.h.b16 %v250
    %v401 = vunpack.c.l.b16 %v251
    %v402 = vunpack.c.h.b16 %v251
    %v403 = vunpack.c.l.b16 %v252
    %v404 = vunpack.c.h.b16 %v252
    %v405 = vunpack.c.l.b16 %v253
    %v406 = vunpack.c.h.b16 %v253
    %v407 = vunpack.c.l.b16 %v254
    %v408 = vunpack.c.h.b16 %v254
    %v409 = vunpack.c.l.b16 %v255
    %v410 = vunpack.c.h.b16 %v255
    %v411 = vunpack.c.l.b16 %v256
    %v412 = vunpack.c.h.b16 %v256
    %v413 = vunpack.c.l.b16 %v257
    %v414 = vunpack.c.h.b16 %v257
    %v415 = vunpack.c.l.b16 %v258
    %v416 = vunpack.c.h.b16 %v258
    %v417 = vunpack.c.l.b16 %v259
    %v418 = vunpack.c.h.b16 %v259
    %v419 = vunpack.c.l.b16 %v260
    %v420 = vunpack.c.h.b16 %v260
    %v421 = vunpack.c.l.b16 %v261
    %v422 = vunpack.c.h.b16 %v261
    %v423 = vunpack.c.l.b16 %v262
    %v424 = vunpack.c.h.b16 %v262
    %v425 = vunpack.c.l.b16 %v263
    %v426 = vunpack.c.h.b16 %v263
    %v427 = vunpack.c.l.b16 %v264
    %v428 = vunpack.c.h.b16 %v264
    %v429 = vunpack.c.l.b16 %v265
    %v430 = vunpack.c.h.b16 %v265
    %v431 = vunpack.c.l.b16 %v266
    %v432 = vunpack.c.h.b16 %v266
    %v433 = vunpack.c.l.b16 %v267
    %v434 = vunpack.c.h.b16 %v267
    %v435 = vunpack.c.l.b16 %v268
    %v436 = vunpack.c.h.b16 %v268
    %v437 = vunpack.c.l.b16 %v269
    %v438 = vunpack.c.h.b16 %v269
    %v439 = vunpack.c.l.b16 %v270
    %v440 = vunpack.c.h.b16 %v270
    %v441 = vunpack.c.l.b16 %v271
    %v442 = vunpack.c.h.b16 %v271
    %v443 = vunpack.c.l.b16 %v272
    %v444 = vunpack.c.h.b16 %v272
    %v445 = vunpack.c.l.b16 %v273
    %v446 = vunpack.c.h.b16 %v273
    %v447 = vunpack.c.l.b16 %v274
    %v448 = vunpack.c.h.b16 %v274
    %v449 = vunpack.c.l.b16 %v275
    %v450 = vunpack.c.h.b16 %v275
    %v451 = vunpack.c.l.b16 %v276
    %v452 = vunpack.c.h.b16 %v276
    %v453 = vunpack.c.l.b16 %v277
    %v454 = vunpack.c.h.b16 %v277
    %v455 = vunpack.c.l.b16 %v278
    %v456 = vunpack.c.h.b16 %v278
    %v457 = vunpack.c.l.b16 %v279
    %v458 = vunpack.c.h.b16 %v279
    %v459 = vunpack.c.l.b16 %v280
    %v460 = vunpack.c.h.b16 %v280
    %v461 = vunpack.c.l.b16 %v281
    %v462 = vunpack.c.h.b16 %v281
    %v463 = vunpack.c.l.b16 %v282
    %v464 = vunpack.c.h.b16 %v282
    %v465 = vunpack.c.l.b16 %v283
    %v466 = vunpack.c.h.b16 %v283
    %v467 = vunpack.c.l.b16 %v284
    %v468 = vunpack.c.h.b16 %v284
    %v469 = vunpack.c.l.b16 %v285
    %v470 = vunpack.c.h.b16 %v285
    %v471 = vunpack.c.l.b16 %v286
    %v472 = vunpack.c.h.b16 %v286
    %v473 = vunpack.c.l.b16 %v287
    %v474 = vunpack.c.h.b16 %v287
    %v475 = vunpack.c.l.b16 %v288
    %v476 = vunpack.c.h.b16 %v288
    %v477 = vunpack.c.l.b16 %v289
    %v478 = vunpack.c.h.b16 %v289
    %v479 = vunpack.c.l.b16 %v290
    %v480 = vunpack.c.h.b16 %v290
    %v481 = vunpack.c.l.b16 %v291
    %v482 = vunpack.c.h.b16 %v291
    %v483 = vunpack.c.l.b16 %v292
    %v484 = vunpack.c.h.b16 %v292
    %v485 = vunpack.c.l.b16 %v293
    %v486 = vunpack.c.h.b16 %v293
    %v487 = vunpack.c.l.b16 %v294
    %v488 = vunpack.c.h.b16 %v294
    %v489 = vunpack.c.l.b16 %v295
    %v490 = vunpack.c.h.b16 %v295
    %v491 = vunpack.c.l.b16 %v296
    %v492 = vunpack.c.h.b16 %v296
    %v493 = vunpack.c.l.b16 %v297
    %v494 = vunpack.c.h.b16 %v297
    %v495 = vunpack.c.l.b16 %v298
    %v496 = vunpack.c.h.b16 %v298
    %v497 = vunpack.c.l.b16 %v299
    %v498 = vunpack.c.h.b16 %v299
    %v499 = vunpack.c.l.b16 %v300
    %v500 = vunpack.c.h.b16 %v300
    %v501 = vunpack.c.l.b16 %v301
    %v502 = vunpack.c.h.b16 %v301
    %v503 = vunpack.c.l.b16 %v302
    %v504 = vunpack.c.h.b16 %v302
    %v505 = vpack.c.b16 %v381, %v377
    %v506 = vpack.c.b16 %v382, %v378
    %v507 = vpack.c.b16 %v383, %v379
    %v508 = vpack.c.b16 %v384, %v380
    %v509 = vpack.c.b16 %v389, %v385
    %v510 = vpack.c.b16 %v390, %v386
    %v511 = vpack.c.b16 %v391, %v387
    %v512 = vpack.c.b16 %v392, %v388
    %v513 = vpack.c.b16 %v397, %v393
    %v514 = vpack.c.b16 %v398, %v394
    %v515 = vpack.c.b16 %v399, %v395
    %v516 = vpack.c.b16 %v400, %v396
    %v517 = vpack.c.b16 %v405, %v401
    %v518 = vpack.c.b16 %v406, %v402
    %v519 = vpack.c.b16 %v407, %v403
    %v520 = vpack.c.b16 %v408, %v404
    %v521 = vpack.c.b16 %v413, %v409
    %v522 = vpack.c.b16 %v414, %v410
    %v523 = vpack.c.b16 %v415, %v411
    %v524 = vpack.c.b16 %v416, %v412
    %v525 = vpack.c.b16 %v421, %v417
    %v526 = vpack.c.b16 %v422, %v418
    %v527 = vpack.c.b16 %v423, %v419
    %v528 = vpack.c.b16 %v424, %v420
    %v529 = vpack.c.b16 %v429, %v425
    %v530 = vpack.c.b16 %v430, %v426
    %v531 = vpack.c.b16 %v431, %v427
    %v532 = vpack.c.b16 %v432, %v428
    %v533 = vpack.c.b16 %v437, %v433
    %v534 = vpack.c.b16 %v438, %v434
    %v535 = vpack.c.b16 %v439, %v435
    %v536 = vpack.c.b16 %v440, %v436
    %v537 = vpack.c.b16 %v445, %v441
    %v538 = vpack.c.b16 %v446, %v442
    %v539 = vpack.c.b16 %v447, %v443
    %v540 = vpack.c.b16 %v448, %v444
    %v541 = vpack.c.b16 %v453, %v449
    %v542 = vpack.c.b16 %v454, %v450
    %v543 = vpack.c.b16 %v455, %v451
    %v544 = vpack.c.b16 %v456, %v452
    %v545 = vpack.c.b16 %v461, %v457
    %v546 = vpack.c.b16 %v462, %v458
    %v547 = vpack.c.b16 %v463, %v459
    %v548 = vpack.c.b16 %v464, %v460
    %v549 = vpack.c.b16 %v469, %v465
    %v550 = vpack.c.b16 %v470, %v466
    %v551 = vpack.c.b16 %v471, %v467
    %v552 = vpack.c.b16 %v472, %v468
    %v553 = vpack.c.b16 %v477, %v473
    %v554 = vpack.c.b16 %v478, %v474
    %v555 = vpack.c.b16 %v479, %v475
    %v556 = vpack.c.b16 %v480, %v476
    %v557 = vpack.c.b16 %v485, %v481
    %v558 = vpack.c.b16 %v486, %v482
    %v559 = vpack.c.b16 %v487, %v483
    %v560 = vpack.c.b16 %v488, %v484
    %v561 = vpack.c.b16 %v493, %v489
    %v562 = vpack.c.b16 %v494, %v490
    %v563 = vpack.c.b16 %v495, %v491
    %v564 = vpack.c.b16 %v496, %v492
    %v565 = vpack.c.b16 %v501, %v497
    %v566 = vpack.c.b16 %v502, %v498
    %v567 = vpack.c.b16 %v503, %v499
    %v568 = vpack.c.b16 %v504, %v500
    %633 = vmatpush.bf16.msra.mxu0 %v533
    %634 = vmatpush.bf16.msra.mxu0 %v529
    %635 = vmatpush.bf16.msra.mxu0 %v525
    %636 = vmatpush.bf16.msra.mxu0 %v521
    %637 = vmatpush.bf16.msra.mxu0 %v517
    %638 = vmatpush.bf16.msra.mxu0 %v513
    %639 = vmatpush.bf16.msra.mxu0 %v509
    %640 = vmatpush.bf16.msra.mxu0 %v505
    %641 = vmatmul.bf16.gmra.mxu0 %v237
    %v642 = vpop.f32.mrf.mxu0
    %v643 = vadd.f32 %v305, %v642
    %v644 = vpop.f32.mrf.mxu0
    %v645 = vadd.f32 %v305, %v644
    %646 = vdwg.mxu0
    %647 = vmatpush.bf16.msra.mxu0 %v565
    %648 = vmatpush.bf16.msra.mxu0 %v561
    %649 = vmatpush.bf16.msra.mxu0 %v557
    %650 = vmatpush.bf16.msra.mxu0 %v553
    %651 = vmatpush.bf16.msra.mxu0 %v549
    %652 = vmatpush.bf16.msra.mxu0 %v545
    %653 = vmatpush.bf16.msra.mxu0 %v541
    %654 = vmatpush.bf16.msra.mxu0 %v537
    %655 = vmatmul.bf16.gmra.mxu0 %v238
    %v656 = vpop.f32.mrf.mxu0
    %v657 = vadd.f32 %v643, %v656
    %v658 = vpop.f32.mrf.mxu0
    %v659 = vadd.f32 %v645, %v658
    %660 = vdwg.mxu0
    %661 = vmatpush.bf16.msra.mxu0 %v534
    %662 = vmatpush.bf16.msra.mxu0 %v530
    %663 = vmatpush.bf16.msra.mxu0 %v526
    %664 = vmatpush.bf16.msra.mxu0 %v522
    %665 = vmatpush.bf16.msra.mxu0 %v518
    %666 = vmatpush.bf16.msra.mxu0 %v514
    %667 = vmatpush.bf16.msra.mxu0 %v510
    %668 = vmatpush.bf16.msra.mxu0 %v506
    %669 = vmatmul.bf16.gmra.mxu0 %v237
    %v670 = vpop.f32.mrf.mxu0
    %v671 = vadd.f32 %v306, %v670
    %v672 = vpop.f32.mrf.mxu0
    %v673 = vadd.f32 %v306, %v672
    %674 = vdwg.mxu0
    %675 = vmatpush.bf16.msra.mxu0 %v566
    %676 = vmatpush.bf16.msra.mxu0 %v562
    %677 = vmatpush.bf16.msra.mxu0 %v558
    %678 = vmatpush.bf16.msra.mxu0 %v554
    %679 = vmatpush.bf16.msra.mxu0 %v550
    %680 = vmatpush.bf16.msra.mxu0 %v546
    %681 = vmatpush.bf16.msra.mxu0 %v542
    %682 = vmatpush.bf16.msra.mxu0 %v538
    %683 = vmatmul.bf16.gmra.mxu0 %v238
    %v684 = vpop.f32.mrf.mxu0
    %v685 = vadd.f32 %v671, %v684
    %v686 = vpop.f32.mrf.mxu0
    %v687 = vadd.f32 %v673, %v686
    %688 = vdwg.mxu0
    %689 = vmatpush.bf16.msra.mxu0 %v535
    %690 = vmatpush.bf16.msra.mxu0 %v531
    %691 = vmatpush.bf16.msra.mxu0 %v527
    %692 = vmatpush.bf16.msra.mxu0 %v523
    %693 = vmatpush.bf16.msra.mxu0 %v519
    %694 = vmatpush.bf16.msra.mxu0 %v515
    %695 = vmatpush.bf16.msra.mxu0 %v511
    %696 = vmatpush.bf16.msra.mxu0 %v507
    %697 = vmatmul.bf16.gmra.mxu0 %v237
    %v698 = vpop.f32.mrf.mxu0
    %v699 = vadd.f32 %v307, %v698
    %v700 = vpop.f32.mrf.mxu0
    %v701 = vadd.f32 %v307, %v700
    %702 = vdwg.mxu0
    %703 = vmatpush.bf16.msra.mxu0 %v567
    %704 = vmatpush.bf16.msra.mxu0 %v563
    %705 = vmatpush.bf16.msra.mxu0 %v559
    %706 = vmatpush.bf16.msra.mxu0 %v555
    %707 = vmatpush.bf16.msra.mxu0 %v551
    %708 = vmatpush.bf16.msra.mxu0 %v547
    %709 = vmatpush.bf16.msra.mxu0 %v543
    %710 = vmatpush.bf16.msra.mxu0 %v539
    %711 = vmatmul.bf16.gmra.mxu0 %v238
    %v712 = vpop.f32.mrf.mxu0
    %v713 = vadd.f32 %v699, %v712
    %v714 = vpop.f32.mrf.mxu0
    %v715 = vadd.f32 %v701, %v714
    %716 = vdwg.mxu0
    %717 = vmatpush.bf16.msra.mxu0 %v536
    %718 = vmatpush.bf16.msra.mxu0 %v532
    %719 = vmatpush.bf16.msra.mxu0 %v528
    %720 = vmatpush.bf16.msra.mxu0 %v524
    %721 = vmatpush.bf16.msra.mxu0 %v520
    %722 = vmatpush.bf16.msra.mxu0 %v516
    %723 = vmatpush.bf16.msra.mxu0 %v512
    %724 = vmatpush.bf16.msra.mxu0 %v508
    %725 = vmatmul.bf16.gmra.mxu0 %v237
    %v726 = vpop.f32.mrf.mxu0
    %v727 = vadd.f32 %v308, %v726
    %v728 = vpop.f32.mrf.mxu0
    %v729 = vadd.f32 %v308, %v728
    %730 = vdwg.mxu0
    %731 = vmatpush.bf16.msra.mxu0 %v568
    %732 = vmatpush.bf16.msra.mxu0 %v564
    %733 = vmatpush.bf16.msra.mxu0 %v560
    %734 = vmatpush.bf16.msra.mxu0 %v556
    %735 = vmatpush.bf16.msra.mxu0 %v552
    %736 = vmatpush.bf16.msra.mxu0 %v548
    %737 = vmatpush.bf16.msra.mxu0 %v544
    %738 = vmatpush.bf16.msra.mxu0 %v540
    %739 = vmatmul.bf16.gmra.mxu0 %v238
    %v740 = vpop.f32.mrf.mxu0
    %v741 = vadd.f32 %v727, %v740
    %v742 = vpop.f32.mrf.mxu0
    %v743 = vadd.f32 %v729, %v742
    %744 = vdwg.mxu0
    %v745 = vmax.f32 %v657, 0.0
    %v746 = vmax.f32 %v685, 0.0
    %v747 = vmax.f32 %v713, 0.0
    %v748 = vmax.f32 %v741, 0.0
    %v749 = vmax.f32 %v659, 0.0
    %v750 = vmax.f32 %v687, 0.0
    %v751 = vmax.f32 %v715, 0.0
    %v752 = vmax.f32 %v743, 0.0
    %v753 = vpack.c.bf16 %v746, %v745
    %v754 = vpack.c.bf16 %v748, %v747
    %v755 = vpack.c.bf16 %v750, %v749
    %v756 = vpack.c.bf16 %v752, %v751
    %757 = vst [vmem:[#allocation11] sm:$0xff] %v753
    %758 = vst [vmem:[#allocation11 + $0x8] sm:$0xff] %v754
    %759 = vst [vmem:[#allocation11 + $0x10] sm:$0xff] %v755
    %760 = vst [vmem:[#allocation11 + $0x18] sm:$0xff] %v756
    // Predicated region
    $region42: #{tpu_custom_call.1} parent=1 // pred_check
      _
    $region43: #{tpu_custom_call.1} parent=1 // pred_check_branch
      %762 = sbr.rel (0) target = $region45
    $region44: #{tpu_custom_call.1} parent=1 // pred_region
      %764 = vsyncadd [#allocation4], 0
      %s765 = sshll.u32 [#allocation11], 4
      %s766 = int_to_ptr.vmem [resolvable:$true] %s765
      %s767 = sshll.u32 %s5, 4
      %s768 = int_to_ptr.hbm [resolvable:$true] %s767
      %773 = dma.vmem_to_hbm [thread:$0]  %s766, 512, %s768, [#allocation4], 256, 256, 16
    $region45: #{tpu_custom_call.1} parent=1 // pred_fallthru
      _
    // Predicated region
    $region46: #{tpu_custom_call.1} parent=1 // pred_check
      _
    $region47: #{tpu_custom_call.1} parent=1 // pred_check_branch
      %775 = sbr.rel (0) target = $region49
    $region48: #{tpu_custom_call.1} parent=1 // pred_region
      %777 = dma.done [#allocation4], 512
    $region49: #{tpu_custom_call.1} parent=1 // pred_fallthru
      _
    %778 = vsyncpa [#allocation3], 1
    %779 = vsyncpa [#allocation6], 1
    %780 = vsyncpa [#allocation9], 1
    %781 = vsyncpa [#allocation4], 1

</llo_original>
